<compile_context>
chip_gen: v6e
topology: v6e:2x2x1
jax: 0.10.0
libtpu: 0.0.40
codegen_flags: <defaults>
</compile_context>

<pallas_src>
import jax
import jax.numpy as jnp
from jax.experimental import pallas as pl
from jax.experimental.pallas import tpu as pltpu

# ----------------------------- dimensions -----------------------------------
OBS = 16          # observation dim
ACT = 4           # action size
LATENT = 8        # latent size
HID = 32          # encoder hidden size
MIN_LOGSTD = -20.0
MAX_LOGSTD = 2.0

A_PAD = ((ACT + 7) // 8) * 8      # action rows padded to the 8-sublane granule

# Row offsets of each zero-padded (HID, HID) *transposed* weight block in the slab.
R_W1X = 0 * HID   # enc layer 1, obs part : w1x^T  (HID, OBS)
R_W1A = 1 * HID   # enc layer 1, act part : w1a^T  (HID, ACT), cols ACT..A_PAD zero
R_W2  = 2 * HID   # enc layer 2           : w2^T   (HID, HID)
R_HD  = 3 * HID   # fused mu|logstd head  : rows [0:L)=wmu^T, [L:2L)=wls^T
R_W3X = 4 * HID   # dec layer 1, obs part : w3x^T  (HID, OBS)
R_W3Z = 5 * HID   # dec layer 1, lat part : w3z^T  (HID, LATENT)
R_W4  = 6 * HID   # dec layer 2           : w4^T   (HID, HID)
R_FC  = 7 * HID   # fc head               : rows [0:ACT)=wfc^T, rest zero
N_WROWS = 8 * HID


# ------------------------------- kernel -------------------------------------
def cvae_kernel(x_ref, a_ref, e_ref, w_ref, b_ref, o_ref):
    f32 = jnp.float32
    cdt = w_ref.dtype                       # MXU operand dtype (f32 or bf16)

    def mm(row, m, k, rhs):
        # Static Ref slice right before the dot: each weight block's live range
        # is a single matmul; nothing big stays resident in vregs.
        w = w_ref[row:row + m, :k]
        return jnp.dot(w, rhs.astype(cdt), preferred_element_type=f32)

    x_t = x_ref[...]                        # (OBS,    tb)
    a_t = a_ref[...]                        # (A_PAD,  tb), rows ACT.. are zero
    e_t = e_ref[...]                        # (LATENT, tb)

    # ---- encoder: EncoderWithAction(x, action) -- concat as split dots ----
    h1 = mm(R_W1X, HID, OBS, x_t) + mm(R_W1A, HID, A_PAD, a_t) + b_ref[:, 0:1]
    h1 = jnp.maximum(h1, 0.0)
    h2 = jnp.maximum(mm(R_W2, HID, HID, h1) + b_ref[:, 1:2], 0.0)

    # ---- fused mu|logstd head + reparameterized sample ----
    head = mm(R_HD, 2 * LATENT, HID, h2) + b_ref[:2 * LATENT, 2:3]
    mu = head[:LATENT, :]
    logstd = jnp.clip(head[LATENT:2 * LATENT, :], MIN_LOGSTD, MAX_LOGSTD)
    z = mu + jnp.exp(logstd) * e_t          # Normal(mu, exp(logstd)).rsample()

    # ---- decoder: EncoderWithAction(x, z) -- concat as split dots ----
    h3 = mm(R_W3X, HID, OBS, x_t) + mm(R_W3Z, HID, LATENT, z) + b_ref[:, 3:4]
    h3 = jnp.maximum(h3, 0.0)
    h4 = jnp.maximum(mm(R_W4, HID, HID, h3) + b_ref[:, 4:5], 0.0)

    # ---- fc head; with_squash=True (d3rlpy default) -> fc(h), NO tanh ----
    # Full zero-padded (HID, HID) block keeps the LHS sublane dim at 32; only
    # the first ACT result rows are meaningful.
    out = mm(R_FC, HID, HID, h4) + b_ref[:, 5:6]
    o_ref[...] = out[:ACT, :].astype(o_ref.dtype)


# --------------------------- parameter packing -------------------------------
def pack_params(p, mxu_dtype=jnp.float32):
    f32 = jnp.float32

    def blk(w_t):
        m, k = w_t.shape
        return jnp.zeros((HID, HID), f32).at[:m, :k].set(w_t.astype(f32))

    wslab = jnp.concatenate([
        blk(p["w1x"].T),                                       # (HID, OBS)
        blk(p["w1a"].T),                                       # (HID, ACT)
        blk(p["w2"].T),                                        # (HID, HID)
        blk(jnp.concatenate([p["wmu"].T, p["wls"].T], 0)),     # (2L, HID)
        blk(p["w3x"].T),                                       # (HID, OBS)
        blk(p["w3z"].T),                                       # (HID, LATENT)
        blk(p["w4"].T),                                        # (HID, HID)
        blk(p["wfc"].T),                                       # (ACT, HID)
    ], axis=0).astype(mxu_dtype)                               # (8*HID, HID)

    bslab = jnp.zeros((HID, 8), f32)                           # biases stay f32
    bslab = bslab.at[:, 0].set(p["b1"][0])
    bslab = bslab.at[:, 1].set(p["b2"][0])
    bslab = bslab.at[:LATENT, 2].set(p["bmu"][0])
    bslab = bslab.at[LATENT:2 * LATENT, 2].set(p["bls"][0])
    bslab = bslab.at[:, 3].set(p["b3"][0])
    bslab = bslab.at[:, 4].set(p["b4"][0])
    bslab = bslab.at[:ACT, 5].set(p["bfc"][0])
    return wslab, bslab


# ------------------------------- wrapper -------------------------------------
def _pick_block_b(bn):
    # Lane-dense batch tiles; prefer >=4 grid steps with a 256+ tile, then >=2
    # steps (the "parallel" axis is what feeds both v7x TensorCores and keeps
    # the activation DMA pipelined), else fall back to a single full-batch step.
    for min_steps, tiles in ((4, (1024, 512, 256)), (2, (1024, 512, 256, 128))):
        for tb in tiles:
            if bn % tb == 0 and bn // tb >= min_steps:
                return tb
    return bn


def conditional_vae_forward(x, action, eps, params, *, block_b=None,
                            mxu_dtype=jnp.float32):
    bn = x.shape[0]
    tb = _pick_block_b(bn) if block_b is None else block_b
    assert bn % tb == 0, "batch must be divisible by the batch tile"
    assert tb == bn or tb % 128 == 0, "batch tile must be lane-aligned (x128)"

    # Layout plumbing only: batch goes on the lane axis (features on sublanes).
    x_t = x.astype(jnp.float32).T                                   # (OBS, bn)
    a_t = jnp.pad(action.astype(jnp.float32),
                  ((0, 0), (0, A_PAD - ACT))).T                     # (A_PAD, bn)
    e_t = eps.astype(jnp.float32).T                                 # (LATENT, bn)
    wslab, bslab = pack_params(params, mxu_dtype)

    grid = (bn // tb,)
    out_t = pl.pallas_call(
        cvae_kernel,
        out_shape=jax.ShapeDtypeStruct((ACT, bn), jnp.float32),
        grid_spec=pltpu.PrefetchScalarGridSpec(
            num_scalar_prefetch=0,
            grid=grid,
            in_specs=[
                pl.BlockSpec((OBS, tb), lambda i: (0, i)),        # x^T   (lane-tiled)
                pl.BlockSpec((A_PAD, tb), lambda i: (0, i)),      # act^T (lane-tiled)
                pl.BlockSpec((LATENT, tb), lambda i: (0, i)),     # eps^T (lane-tiled)
                pl.BlockSpec((N_WROWS, HID), lambda i: (0, 0)),   # weight slab (resident)
                pl.BlockSpec((HID, 8), lambda i: (0, 0)),         # bias slab (resident)
            ],
            out_specs=pl.BlockSpec((ACT, tb), lambda i: (0, i)),  # lane-dense store
        ),
        compiler_params=pltpu.CompilerParams(
            dimension_semantics=("parallel",)),
    )(x_t, a_t, e_t, wslab, bslab)
    return out_t.T                                                  # (bn, ACT)


# --------------------------- pure-JAX reference -------------------------------
def reference_forward(x, action, eps, p):
    relu = lambda v: jnp.maximum(v, 0.0)
    h1 = relu(x @ p["w1x"] + action @ p["w1a"] + p["b1"])
    h2 = relu(h1 @ p["w2"] + p["b2"])
    mu = h2 @ p["wmu"] + p["bmu"]
    logstd = jnp.clip(h2 @ p["wls"] + p["bls"], MIN_LOGSTD, MAX_LOGSTD)
    z = mu + jnp.exp(logstd) * eps
    h3 = relu(x @ p["w3x"] + z @ p["w3z"] + p["b3"])
    h4 = relu(h3 @ p["w4"] + p["b4"])
    return h4 @ p["wfc"] + p["bfc"]          # with_squash=True default: no tanh


# --------------------------------- main ---------------------------------------
if __name__ == "__main__":
    key = jax.random.PRNGKey(0)
    ks = jax.random.split(key, 24)

    def w(k, shape, scale=0.1):
        return (scale * jax.random.normal(k, shape)).astype(jnp.float32)

    params = {
        # encoder's EncoderWithAction: Linear(obs+act -> HID), Linear(HID -> HID)
        "w1x": w(ks[0], (OBS, HID)), "w1a": w(ks[1], (ACT, HID)), "b1": w(ks[2], (1, HID)),
        "w2":  w(ks[3], (HID, HID)), "b2":  w(ks[4], (1, HID)),
        # mu / logstd heads: Linear(HID -> LATENT)
        "wmu": w(ks[5], (HID, LATENT)), "bmu": w(ks[6], (1, LATENT)),
        "wls": w(ks[7], (HID, LATENT)), "bls": w(ks[8], (1, LATENT)),
        # decoder's EncoderWithAction: Linear(obs+latent -> HID), Linear(HID -> HID)
        "w3x": w(ks[9], (OBS, HID)), "w3z": w(ks[10], (LATENT, HID)), "b3": w(ks[11], (1, HID)),
        "w4":  w(ks[12], (HID, HID)), "b4":  w(ks[13], (1, HID)),
        # decoder fc head: Linear(HID -> ACT)
        "wfc": w(ks[14], (HID, ACT)), "bfc": w(ks[15], (1, ACT)),
    }

    # Batch sits on the 128-lane axis -> use a lane-sized batch (still tiny work).
    B = 512                                   # default tile 256 -> grid=(2,)
    x = jax.random.normal(ks[16], (B, OBS), dtype=jnp.float32)
    action = jax.random.normal(ks[17], (B, ACT), dtype=jnp.float32)
    # rsample noise is drawn outside the kernel (reparameterization trick).
    eps = jax.random.normal(ks[18], (B, LATENT), dtype=jnp.float32)

    out = jax.block_until_ready(conditional_vae_forward(x, action, eps, params))
    ref = reference_forward(x, action, eps, params)
    assert out.shape == (B, ACT)
    assert jnp.allclose(out, ref, atol=1e-5, rtol=1e-5), "mismatch vs reference (f32)"

    # Larger batch with an explicit lane tile -> 4 pipelined "parallel" grid steps.
    B2 = 1024
    x2 = jax.random.normal(ks[19], (B2, OBS), dtype=jnp.float32)
    a2 = jax.random.normal(ks[20], (B2, ACT), dtype=jnp.float32)
    e2 = jax.random.normal(ks[21], (B2, LATENT), dtype=jnp.float32)
    out2 = jax.block_until_ready(
        conditional_vae_forward(x2, a2, e2, params, block_b=256))
    ref2 = reference_forward(x2, a2, e2, params)
    assert jnp.allclose(out2, ref2, atol=1e-5, rtol=1e-5), "mismatch vs reference (tiled)"

    # bf16 MXU operands (the v6e/v7x choice); elementwise math stays f32, only
    # matmul operand rounding differs -> loose tolerance against the f32 reference.
    out_bf = jax.block_until_ready(
        conditional_vae_forward(x, action, eps, params, mxu_dtype=jnp.bfloat16))
    assert out_bf.shape == (B, ACT)
    assert jnp.allclose(out_bf, ref, atol=5e-2, rtol=5e-2), "mismatch vs reference (bf16)"

    print("KERNEL_OK")
</pallas_src>

<mosaic_0001>
module attributes {stable_mosaic.version = 11 : i64} {
  func.func @cvae_kernel(%arg0: i32, %arg1: memref<16x256xf32, #tpu.memory_space<vmem>>, %arg2: memref<8x256xf32, #tpu.memory_space<vmem>>, %arg3: memref<8x256xf32, #tpu.memory_space<vmem>>, %arg4: memref<256x32xf32, #tpu.memory_space<vmem>>, %arg5: memref<32x8xf32, #tpu.memory_space<vmem>>, %arg6: memref<4x256xf32, #tpu.memory_space<vmem>>) attributes {dimension_semantics = [#tpu.dimension_semantics<parallel>], iteration_bounds = array<i64: 2>, scalar_prefetch = 0 : i64, scratch_operands = 0 : i64, tpu.core_type = #tpu.core_type<tc>, window_params = [{transform_indices = @transform_0, window_bounds = array<i64: 16, 256>}, {transform_indices = @transform_1, window_bounds = array<i64: 8, 256>}, {transform_indices = @transform_2, window_bounds = array<i64: 8, 256>}, {pipeline_mode = #tpu.pipeline_mode<synchronous>, transform_indices = @transform_3, window_bounds = array<i64: 256, 32>}, {pipeline_mode = #tpu.pipeline_mode<synchronous>, transform_indices = @transform_4, window_bounds = array<i64: 32, 8>}, {transform_indices = @transform_5, window_bounds = array<i64: 4, 256>}]} {
    %c0 = arith.constant 0 : index
    %c0_0 = arith.constant 0 : index
    %0 = vector.load %arg1[%c0, %c0_0] : memref<16x256xf32, #tpu.memory_space<vmem>>, vector<16x256xf32>
    %c0_1 = arith.constant 0 : index
    %c0_2 = arith.constant 0 : index
    %1 = vector.load %arg2[%c0_1, %c0_2] : memref<8x256xf32, #tpu.memory_space<vmem>>, vector<8x256xf32>
    %c0_3 = arith.constant 0 : index
    %c0_4 = arith.constant 0 : index
    %2 = vector.load %arg3[%c0_3, %c0_4] : memref<8x256xf32, #tpu.memory_space<vmem>>, vector<8x256xf32>
    %c0_5 = arith.constant 0 : index
    %c0_6 = arith.constant 0 : index
    %3 = vector.load %arg4[%c0_5, %c0_6] : memref<256x32xf32, #tpu.memory_space<vmem>>, vector<32x16xf32>
    %cst = arith.constant dense<0.000000e+00> : vector<32x256xf32>
    %4 = tpu.matmul %3, %0, %cst {dimension_numbers = #tpu.dot_dimension_numbers<[1], [0], [0], [1], [0, 0, 1, 1], [], []>} : vector<32x16xf32>, vector<16x256xf32>, vector<32x256xf32> -> vector<32x256xf32>
    %c32 = arith.constant 32 : index
    %c0_7 = arith.constant 0 : index
    %5 = vector.load %arg4[%c32, %c0_7] : memref<256x32xf32, #tpu.memory_space<vmem>>, vector<32x8xf32>
    %cst_8 = arith.constant dense<0.000000e+00> : vector<32x256xf32>
    %6 = tpu.matmul %5, %1, %cst_8 {dimension_numbers = #tpu.dot_dimension_numbers<[1], [0], [0], [1], [0, 0, 1, 1], [], []>} : vector<32x8xf32>, vector<8x256xf32>, vector<32x256xf32> -> vector<32x256xf32>
    %7 = arith.addf %4, %6 : vector<32x256xf32>
    %c0_9 = arith.constant 0 : index
    %c0_10 = arith.constant 0 : index
    %8 = vector.load %arg5[%c0_9, %c0_10] : memref<32x8xf32, #tpu.memory_space<vmem>>, vector<32x1xf32>
    %9 = vector.broadcast %8 : vector<32x1xf32> to vector<32x256xf32>
    %10 = arith.addf %7, %9 : vector<32x256xf32>
    %cst_11 = arith.constant 0.000000e+00 : f32
    %11 = vector.broadcast %cst_11 : f32 to vector<32x256xf32>
    %12 = arith.maximumf %10, %11 : vector<32x256xf32>
    %c64 = arith.constant 64 : index
    %c0_12 = arith.constant 0 : index
    %13 = vector.load %arg4[%c64, %c0_12] : memref<256x32xf32, #tpu.memory_space<vmem>>, vector<32x32xf32>
    %cst_13 = arith.constant dense<0.000000e+00> : vector<32x256xf32>
    %14 = tpu.matmul %13, %12, %cst_13 {dimension_numbers = #tpu.dot_dimension_numbers<[1], [0], [0], [1], [0, 0, 1, 1], [], []>} : vector<32x32xf32>, vector<32x256xf32>, vector<32x256xf32> -> vector<32x256xf32>
    %c0_14 = arith.constant 0 : index
    %c1 = arith.constant 1 : index
    %15 = vector.load %arg5[%c0_14, %c1] : memref<32x8xf32, #tpu.memory_space<vmem>>, vector<32x1xf32>
    %16 = vector.broadcast %15 : vector<32x1xf32> to vector<32x256xf32>
    %17 = arith.addf %14, %16 : vector<32x256xf32>
    %cst_15 = arith.constant 0.000000e+00 : f32
    %18 = vector.broadcast %cst_15 : f32 to vector<32x256xf32>
    %19 = arith.maximumf %17, %18 : vector<32x256xf32>
    %c96 = arith.constant 96 : index
    %c0_16 = arith.constant 0 : index
    %20 = vector.load %arg4[%c96, %c0_16] : memref<256x32xf32, #tpu.memory_space<vmem>>, vector<16x32xf32>
    %cst_17 = arith.constant dense<0.000000e+00> : vector<16x256xf32>
    %21 = tpu.matmul %20, %19, %cst_17 {dimension_numbers = #tpu.dot_dimension_numbers<[1], [0], [0], [1], [0, 0, 1, 1], [], []>} : vector<16x32xf32>, vector<32x256xf32>, vector<16x256xf32> -> vector<16x256xf32>
    %c0_18 = arith.constant 0 : index
    %c2 = arith.constant 2 : index
    %22 = vector.load %arg5[%c0_18, %c2] : memref<32x8xf32, #tpu.memory_space<vmem>>, vector<16x1xf32>
    %23 = vector.broadcast %22 : vector<16x1xf32> to vector<16x256xf32>
    %24 = arith.addf %21, %23 : vector<16x256xf32>
    %25 = vector.extract_strided_slice %24 {offsets = [0, 0], sizes = [8, 256], strides = [1, 1]} : vector<16x256xf32> to vector<8x256xf32>
    %26 = vector.extract_strided_slice %24 {offsets = [8, 0], sizes = [8, 256], strides = [1, 1]} : vector<16x256xf32> to vector<8x256xf32>
    %cst_19 = arith.constant -2.000000e+01 : f32
    %cst_20 = arith.constant 2.000000e+00 : f32
    %27 = vector.broadcast %cst_19 : f32 to vector<8x256xf32>
    %28 = arith.maximumf %27, %26 : vector<8x256xf32>
    %29 = vector.broadcast %cst_20 : f32 to vector<8x256xf32>
    %30 = arith.minimumf %29, %28 : vector<8x256xf32>
    %31 = math.exp %30 : vector<8x256xf32>
    %32 = arith.mulf %31, %2 : vector<8x256xf32>
    %33 = arith.addf %25, %32 : vector<8x256xf32>
    %c128 = arith.constant 128 : index
    %c0_21 = arith.constant 0 : index
    %34 = vector.load %arg4[%c128, %c0_21] : memref<256x32xf32, #tpu.memory_space<vmem>>, vector<32x16xf32>
    %cst_22 = arith.constant dense<0.000000e+00> : vector<32x256xf32>
    %35 = tpu.matmul %34, %0, %cst_22 {dimension_numbers = #tpu.dot_dimension_numbers<[1], [0], [0], [1], [0, 0, 1, 1], [], []>} : vector<32x16xf32>, vector<16x256xf32>, vector<32x256xf32> -> vector<32x256xf32>
    %c160 = arith.constant 160 : index
    %c0_23 = arith.constant 0 : index
    %36 = vector.load %arg4[%c160, %c0_23] : memref<256x32xf32, #tpu.memory_space<vmem>>, vector<32x8xf32>
    %cst_24 = arith.constant dense<0.000000e+00> : vector<32x256xf32>
    %37 = tpu.matmul %36, %33, %cst_24 {dimension_numbers = #tpu.dot_dimension_numbers<[1], [0], [0], [1], [0, 0, 1, 1], [], []>} : vector<32x8xf32>, vector<8x256xf32>, vector<32x256xf32> -> vector<32x256xf32>
    %38 = arith.addf %35, %37 : vector<32x256xf32>
    %c0_25 = arith.constant 0 : index
    %c3 = arith.constant 3 : index
    %39 = vector.load %arg5[%c0_25, %c3] : memref<32x8xf32, #tpu.memory_space<vmem>>, vector<32x1xf32>
    %40 = vector.broadcast %39 : vector<32x1xf32> to vector<32x256xf32>
    %41 = arith.addf %38, %40 : vector<32x256xf32>
    %cst_26 = arith.constant 0.000000e+00 : f32
    %42 = vector.broadcast %cst_26 : f32 to vector<32x256xf32>
    %43 = arith.maximumf %41, %42 : vector<32x256xf32>
    %c192 = arith.constant 192 : index
    %c0_27 = arith.constant 0 : index
    %44 = vector.load %arg4[%c192, %c0_27] : memref<256x32xf32, #tpu.memory_space<vmem>>, vector<32x32xf32>
    %cst_28 = arith.constant dense<0.000000e+00> : vector<32x256xf32>
    %45 = tpu.matmul %44, %43, %cst_28 {dimension_numbers = #tpu.dot_dimension_numbers<[1], [0], [0], [1], [0, 0, 1, 1], [], []>} : vector<32x32xf32>, vector<32x256xf32>, vector<32x256xf32> -> vector<32x256xf32>
    %c0_29 = arith.constant 0 : index
    %c4 = arith.constant 4 : index
    %46 = vector.load %arg5[%c0_29, %c4] : memref<32x8xf32, #tpu.memory_space<vmem>>, vector<32x1xf32>
    %47 = vector.broadcast %46 : vector<32x1xf32> to vector<32x256xf32>
    %48 = arith.addf %45, %47 : vector<32x256xf32>
    %cst_30 = arith.constant 0.000000e+00 : f32
    %49 = vector.broadcast %cst_30 : f32 to vector<32x256xf32>
    %50 = arith.maximumf %48, %49 : vector<32x256xf32>
    %c224 = arith.constant 224 : index
    %c0_31 = arith.constant 0 : index
    %51 = vector.load %arg4[%c224, %c0_31] : memref<256x32xf32, #tpu.memory_space<vmem>>, vector<32x32xf32>
    %cst_32 = arith.constant dense<0.000000e+00> : vector<32x256xf32>
    %52 = tpu.matmul %51, %50, %cst_32 {dimension_numbers = #tpu.dot_dimension_numbers<[1], [0], [0], [1], [0, 0, 1, 1], [], []>} : vector<32x32xf32>, vector<32x256xf32>, vector<32x256xf32> -> vector<32x256xf32>
    %c0_33 = arith.constant 0 : index
    %c5 = arith.constant 5 : index
    %53 = vector.load %arg5[%c0_33, %c5] : memref<32x8xf32, #tpu.memory_space<vmem>>, vector<32x1xf32>
    %54 = vector.broadcast %53 : vector<32x1xf32> to vector<32x256xf32>
    %55 = arith.addf %52, %54 : vector<32x256xf32>
    %56 = vector.extract_strided_slice %55 {offsets = [0, 0], sizes = [4, 256], strides = [1, 1]} : vector<32x256xf32> to vector<4x256xf32>
    %c0_34 = arith.constant 0 : index
    %c0_35 = arith.constant 0 : index
    %57 = vector.load %arg6[%c0_34, %c0_35] : memref<4x256xf32, #tpu.memory_space<vmem>>, vector<4x256xf32>
    tpu.vector_store %arg6[%c0_34, %c0_35], %56 {strides = array<i32>} : memref<4x256xf32, #tpu.memory_space<vmem>>, vector<4x256xf32>,
    return
  }
  func.func @transform_0(%arg0: i32) -> (i32, i32) {
    %c0_i32 = arith.constant 0 : i32
    %c0_i32_0 = arith.constant 0 : i32
    return %c0_i32, %arg0 : i32, i32
  }
  func.func @transform_1(%arg0: i32) -> (i32, i32) {
    %c0_i32 = arith.constant 0 : i32
    %c0_i32_0 = arith.constant 0 : i32
    return %c0_i32, %arg0 : i32, i32
  }
  func.func @transform_2(%arg0: i32) -> (i32, i32) {
    %c0_i32 = arith.constant 0 : i32
    %c0_i32_0 = arith.constant 0 : i32
    return %c0_i32, %arg0 : i32, i32
  }
  func.func @transform_3(%arg0: i32) -> (i32, i32) {
    %c0_i32 = arith.constant 0 : i32
    %c0_i32_0 = arith.constant 0 : i32
    %c0_i32_1 = arith.constant 0 : i32
    return %c0_i32, %c0_i32_0 : i32, i32
  }
  func.func @transform_4(%arg0: i32) -> (i32, i32) {
    %c0_i32 = arith.constant 0 : i32
    %c0_i32_0 = arith.constant 0 : i32
    %c0_i32_1 = arith.constant 0 : i32
    return %c0_i32, %c0_i32_0 : i32, i32
  }
  func.func @transform_5(%arg0: i32) -> (i32, i32) {
    %c0_i32 = arith.constant 0 : i32
    %c0_i32_0 = arith.constant 0 : i32
    return %c0_i32, %arg0 : i32, i32
  }
}

</mosaic_0001>

<llo_original>
// kernel: tpu_custom_call.1
$region0: #{tpu_custom_call.1}
  #allocation0 [shape = 'u32[]', space=smem, size = 0x4, offset = 0x4, fixed_abs, tag = 'smem constant byte address 0x4 - core index']
  #allocation1 [shape = 'u32[144,128]{1,0:T(1,128)}', space=vmem, size = 0x12000, scoped, tag = 'internal scratch']
  %s0 = inlined_call_operand.vmem [shape: f32[16,512], index: 0, kind: input, shape index: {}]
  %s1 = inlined_call_operand.vmem [shape: f32[8,512], index: 1, kind: input, shape index: {}]
  %s2 = inlined_call_operand.vmem [shape: f32[8,512], index: 2, kind: input, shape index: {}]
  %s3 = inlined_call_operand.vmem [shape: f32[256,32], index: 3, kind: input, shape index: {}]
  %s4 = inlined_call_operand.vmem [shape: f32[32,8], index: 4, kind: input, shape index: {}]
  %s5 = inlined_call_operand.hbm [shape: f32[4,512], index: 5, kind: output, shape index: {}]
  %s6 = sld [smem:[#allocation0]]
  $region76: #{tpu_custom_call.1} parent=0
    _
  %s8 = ssub.s32 1, %s6
  %s9 = scalar_select 0, %s8, %s6
  $region1: #{tpu_custom_call.1} parent=0
    #allocation2 [shape = 'u8[32768]{0}', space=vmem, size = 0x8000, scoped, tag = 'input window, operand 0']
    #allocation3 [shape = 'u8[8192]{0}', space=vmem, size = 0x2000, scoped, tag = 'output window, operand 0']
    #allocation4 [shape = 's32[2]{0}', space=sflag, size = 0x8, scoped, tag = 'scoped memory for tpu_custom_call.1']
    %10 = vsyncpa [#allocation4], 0
    %s11 = scalar_lea.sflag [#allocation4], 1
    %12 = vsyncpa %s11, 0
    loop: start=0, step=1, limit=4
    $region2: #{tpu_custom_call.1} parent=1 // loop_pre_header
      _
    $region3: #{tpu_custom_call.1} parent=1 // loop_header
      %s14 = sphi 0, %s18
      %p15 = scmp.ge.s32.totalorder %s14, 4
      %s24 = sphi 0, %s26
      %s27 = sphi 0, %s24
      %s28 = sphi 0, %s27
      %s44 = sphi 0, %s28
      %s50 = sphi 0, %s52
      %s53 = sphi 0, %s50
      %s54 = sphi 0, %s53
      %s70 = sphi 0, %s54
      %s76 = sphi 0, %s78
      %s79 = sphi 0, %s76
      %s80 = sphi 0, %s79
      %s96 = sphi 0, %s80
      %s100 = sphi 0, %s100
      %s102 = sphi 0, %s100
      %s103 = sphi 0, %s102
      %s117 = sphi 0, %s103
      %s121 = sphi 0, %s121
      %s123 = sphi 0, %s121
      %s124 = sphi 0, %s123
      %s138 = sphi 0, %s124
      %s144 = sphi 0, %s146
      %s147 = sphi 0, %s144
      %s148 = sphi 0, %s147
      %s164 = sphi 0, %s148
    $region4: #{tpu_custom_call.1} parent=1 // loop_header_branch
      %17 = sbr.rel (%p15) target = $region8
    $region5: #{tpu_custom_call.1} parent=1 // loop_body
      %s19 = ssub.s32 %s14, 1
      %s20 = ssub.s32 %s14, 2
      %s21 = sadd.s32 %s14, 1
      %s22 = ssub.s32 %s14, %s21
      %p23 = scmp.eq.s32.totalorder %s22, 0
      %s25 = sadd.s32 %s24, 1
      %s26 = scalar_select %p23, %s24, %s25
      %p29 = pneg %p23
      %p30 = scmp.eq.s32.totalorder %s14, 1
      %p31 = por %p29, %p30
      %p32 = scmp.ne.s32.totalorder %s24, %s27
      %p33 = scmp.eq.s32.totalorder %s14, 0
      %p34 = por %p32, %p33
      %p35 = scmp.ne.s32.totalorder %s24, %s27
      %p36 = scmp.eq.s32.totalorder %s19, 1
      %p37 = por %p35, %p36
      %p38 = scmp.ne.s32.totalorder %s27, %s28
      %p39 = scmp.eq.s32.totalorder %s19, 0
      %p40 = por %p38, %p39
      %p41 = scmp.ne.s32.totalorder %s27, %s28
      %p42 = scmp.eq.s32.totalorder %s20, 1
      %p43 = por %p41, %p42
      %p45 = scmp.ne.s32.totalorder %s28, %s44
      %p46 = scmp.eq.s32.totalorder %s20, 0
      %p47 = por %p45, %p46
      %s48 = ssub.s32 %s14, %s21
      %p49 = scmp.eq.s32.totalorder %s48, 0
      %s51 = sadd.s32 %s50, 1
      %s52 = scalar_select %p49, %s50, %s51
      %p55 = pneg %p49
      %p56 = scmp.eq.s32.totalorder %s14, 1
      %p57 = por %p55, %p56
      %p58 = scmp.ne.s32.totalorder %s50, %s53
      %p59 = scmp.eq.s32.totalorder %s14, 0
      %p60 = por %p58, %p59
      %p61 = scmp.ne.s32.totalorder %s50, %s53
      %p62 = scmp.eq.s32.totalorder %s19, 1
      %p63 = por %p61, %p62
      %p64 = scmp.ne.s32.totalorder %s53, %s54
      %p65 = scmp.eq.s32.totalorder %s19, 0
      %p66 = por %p64, %p65
      %p67 = scmp.ne.s32.totalorder %s53, %s54
      %p68 = scmp.eq.s32.totalorder %s20, 1
      %p69 = por %p67, %p68
      %p71 = scmp.ne.s32.totalorder %s54, %s70
      %p72 = scmp.eq.s32.totalorder %s20, 0
      %p73 = por %p71, %p72
      %s74 = ssub.s32 %s14, %s21
      %p75 = scmp.eq.s32.totalorder %s74, 0
      %s77 = sadd.s32 %s76, 1
      %s78 = scalar_select %p75, %s76, %s77
      %p81 = pneg %p75
      %p82 = scmp.eq.s32.totalorder %s14, 1
      %p83 = por %p81, %p82
      %p84 = scmp.ne.s32.totalorder %s76, %s79
      %p85 = scmp.eq.s32.totalorder %s14, 0
      %p86 = por %p84, %p85
      %p87 = scmp.ne.s32.totalorder %s76, %s79
      %p88 = scmp.eq.s32.totalorder %s19, 1
      %p89 = por %p87, %p88
      %p90 = scmp.ne.s32.totalorder %s79, %s80
      %p91 = scmp.eq.s32.totalorder %s19, 0
      %p92 = por %p90, %p91
      %p93 = scmp.ne.s32.totalorder %s79, %s80
      %p94 = scmp.eq.s32.totalorder %s20, 1
      %p95 = por %p93, %p94
      %p97 = scmp.ne.s32.totalorder %s80, %s96
      %p98 = scmp.eq.s32.totalorder %s20, 0
      %p99 = por %p97, %p98
      %s101 = sadd.s32 %s100, 1
      %p104 = scmp.eq.s32.totalorder %s14, 1
      %p105 = scmp.ne.s32.totalorder %s100, %s102
      %p106 = scmp.eq.s32.totalorder %s14, 0
      %p107 = por %p105, %p106
      %p108 = scmp.ne.s32.totalorder %s100, %s102
      %p109 = scmp.eq.s32.totalorder %s19, 1
      %p110 = por %p108, %p109
      %p111 = scmp.ne.s32.totalorder %s102, %s103
      %p112 = scmp.eq.s32.totalorder %s19, 0
      %p113 = por %p111, %p112
      %p114 = scmp.ne.s32.totalorder %s102, %s103
      %p115 = scmp.eq.s32.totalorder %s20, 1
      %p116 = por %p114, %p115
      %p118 = scmp.ne.s32.totalorder %s103, %s117
      %p119 = scmp.eq.s32.totalorder %s20, 0
      %p120 = por %p118, %p119
      %s122 = sadd.s32 %s121, 1
      %p125 = scmp.eq.s32.totalorder %s14, 1
      %p126 = scmp.ne.s32.totalorder %s121, %s123
      %p127 = scmp.eq.s32.totalorder %s14, 0
      %p128 = por %p126, %p127
      %p129 = scmp.ne.s32.totalorder %s121, %s123
      %p130 = scmp.eq.s32.totalorder %s19, 1
      %p131 = por %p129, %p130
      %p132 = scmp.ne.s32.totalorder %s123, %s124
      %p133 = scmp.eq.s32.totalorder %s19, 0
      %p134 = por %p132, %p133
      %p135 = scmp.ne.s32.totalorder %s123, %s124
      %p136 = scmp.eq.s32.totalorder %s20, 1
      %p137 = por %p135, %p136
      %p139 = scmp.ne.s32.totalorder %s124, %s138
      %p140 = scmp.eq.s32.totalorder %s20, 0
      %p141 = por %p139, %p140
      %s142 = ssub.s32 %s14, %s21
      %p143 = scmp.eq.s32.totalorder %s142, 0
      %s145 = sadd.s32 %s144, 1
      %s146 = scalar_select %p143, %s144, %s145
      %p149 = pneg %p143
      %p150 = scmp.eq.s32.totalorder %s14, 1
      %p151 = por %p149, %p150
      %p152 = scmp.ne.s32.totalorder %s144, %s147
      %p153 = scmp.eq.s32.totalorder %s14, 0
      %p154 = por %p152, %p153
      %p155 = scmp.ne.s32.totalorder %s144, %s147
      %p156 = scmp.eq.s32.totalorder %s19, 1
      %p157 = por %p155, %p156
      %p158 = scmp.ne.s32.totalorder %s147, %s148
      %p159 = scmp.eq.s32.totalorder %s19, 0
      %p160 = por %p158, %p159
      %p161 = scmp.ne.s32.totalorder %s147, %s148
      %p162 = scmp.eq.s32.totalorder %s20, 1
      %p163 = por %p161, %p162
      %p165 = scmp.ne.s32.totalorder %s148, %s164
      %p166 = scmp.eq.s32.totalorder %s20, 0
      %p167 = por %p165, %p166
      %p168 = scmp.le.s32.totalorder 1, %s14
      %p169 = scmp.lt.s32.totalorder %s14, 3
      %p170 = pnand %p168, %p169
      %p171 = pneg %p170
      // Predicated region
      $region9: #{tpu_custom_call.1} parent=5 // pred_check
        _
      $region10: #{tpu_custom_call.1} parent=5 // pred_check_branch
        %173 = sbr.rel (%p170) target = $region12
      $region11: #{tpu_custom_call.1} parent=5 // pred_region
        %s174 = ssub.s32 %s14, 1
        // Predicated region
        $region13: #{tpu_custom_call.1} parent=11 // pred_check
          %p175 = pneg %p113
        $region14: #{tpu_custom_call.1} parent=11 // pred_check_branch
          %177 = sbr.rel (%p175) target = $region16
        $region15: #{tpu_custom_call.1} parent=11 // pred_region
          _
        $region16: #{tpu_custom_call.1} parent=11 // pred_fallthru
          _
        // Predicated region
        $region17: #{tpu_custom_call.1} parent=11 // pred_check
          %p178 = pneg %p134
        $region18: #{tpu_custom_call.1} parent=11 // pred_check_branch
          %180 = sbr.rel (%p178) target = $region20
        $region19: #{tpu_custom_call.1} parent=11 // pred_region
          _
        $region20: #{tpu_custom_call.1} parent=11 // pred_fallthru
          _
      $region12: #{tpu_custom_call.1} parent=5 // pred_fallthru
        _
      %p181 = scmp.lt.s32.totalorder %s14, 2
      // Predicated region
      $region21: #{tpu_custom_call.1} parent=5 // pred_check
        %p182 = pneg %p181
      $region22: #{tpu_custom_call.1} parent=5 // pred_check_branch
        %184 = sbr.rel (%p182) target = $region24
      $region23: #{tpu_custom_call.1} parent=5 // pred_region
        // Predicated region
        $region25: #{tpu_custom_call.1} parent=23 // pred_check
          %p185 = pneg %p34
        $region26: #{tpu_custom_call.1} parent=23 // pred_check_branch
          %187 = sbr.rel (%p185) target = $region28
        $region27: #{tpu_custom_call.1} parent=23 // pred_region
          %s188 = sand.u32 %s24, 1
          %s189 = sand.u32 %s24, 1
          %s190 = smul.addr %s189, 32
          %s191 = scalar_lea.vmem [#allocation2], %s190
          %s192 = smul.u32 2, %s14
          %s193 = smul.addr %s192, 8
          %s194 = scalar_lea.vmem %s0, %s193
          // Predicated region
          $region29: #{tpu_custom_call.1} parent=27 // pred_check
            _
          $region30: #{tpu_custom_call.1} parent=27 // pred_check_branch
            %196 = sbr.rel (0) target = $region32
          $region31: #{tpu_custom_call.1} parent=27 // pred_region
            // Predicated region
            $region33: #{tpu_custom_call.1} parent=31 // pred_check
              _
            $region34: #{tpu_custom_call.1} parent=31 // pred_check_branch
              %198 = sbr.rel (0) target = $region36
            $region35: #{tpu_custom_call.1} parent=31 // pred_region
              loop: start=0, step=1, limit=1
              $region37: #{tpu_custom_call.1} parent=35 // loop_pre_header
                _
              $region38: #{tpu_custom_call.1} parent=35 // loop_header
                %s200 = sphi 0, %s204
                %p201 = scmp.ge.s32.totalorder %s200, 1
                %s205 = sphi %s194, %s194
                %s206 = sphi %s191, %s191
              $region39: #{tpu_custom_call.1} parent=35 // loop_header_branch
                %203 = sbr.rel (%p201) target = $region43
              $region40: #{tpu_custom_call.1} parent=35 // loop_body
                %v207 = vld [vmem:[%s205] sm:$0xff]
                %208 = vst [vmem:[%s206] sm:$0xff] %v207
                %v209 = vld [vmem:[%s205 + $0x8] sm:$0xff]
                %210 = vst [vmem:[%s206 + $0x8] sm:$0xff] %v209
                %v211 = vld [vmem:[%s205 + $0x20] sm:$0xff]
                %212 = vst [vmem:[%s206 + $0x10] sm:$0xff] %v211
                %v213 = vld [vmem:[%s205 + $0x28] sm:$0xff]
                %214 = vst [vmem:[%s206 + $0x18] sm:$0xff] %v213
              $region41: #{tpu_custom_call.1} parent=35 // loop_footer
                %s204 = sadd.s32 1, %s200
              $region42: #{tpu_custom_call.1} parent=35 // loop_footer_branch
                %199 = sbr.rel target = $region38
              $region43: #{tpu_custom_call.1} parent=35 // loop_exit
                _
            $region36: #{tpu_custom_call.1} parent=31 // pred_fallthru
              _
            // Predicated region
            $region44: #{tpu_custom_call.1} parent=31 // pred_check
              _
            $region45: #{tpu_custom_call.1} parent=31 // pred_check_branch
              %216 = sbr.rel target = $region47
            $region46: #{tpu_custom_call.1} parent=31 // pred_region
              _
            $region47: #{tpu_custom_call.1} parent=31 // pred_fallthru
              _
          $region32: #{tpu_custom_call.1} parent=27 // pred_fallthru
            _
          %217 = vnop
        $region28: #{tpu_custom_call.1} parent=23 // pred_fallthru
          _
        // Predicated region
        $region48: #{tpu_custom_call.1} parent=23 // pred_check
          %p218 = pneg %p60
        $region49: #{tpu_custom_call.1} parent=23 // pred_check_branch
          %220 = sbr.rel (%p218) target = $region51
        $region50: #{tpu_custom_call.1} parent=23 // pred_region
          %s221 = smul.u32 2, %s14
          %p222 = scmp.lt.s32.totalorder %s221, 3
          %s223 = scalar_select %p222, %s221, 3
          %s224 = smul.addr %s223, 8
          %s225 = scalar_lea.vmem %s1, %s224
          %s226 = smul.u32 2, %s14
        $region51: #{tpu_custom_call.1} parent=23 // pred_fallthru
          _
        // Predicated region
        $region52: #{tpu_custom_call.1} parent=23 // pred_check
          %p227 = pneg %p86
        $region53: #{tpu_custom_call.1} parent=23 // pred_check_branch
          %229 = sbr.rel (%p227) target = $region55
        $region54: #{tpu_custom_call.1} parent=23 // pred_region
          %s230 = smul.u32 2, %s14
          %p231 = scmp.lt.s32.totalorder %s230, 3
          %s232 = scalar_select %p231, %s230, 3
          %s233 = smul.addr %s232, 8
          %s234 = scalar_lea.vmem %s2, %s233
          %s235 = smul.u32 2, %s14
        $region55: #{tpu_custom_call.1} parent=23 // pred_fallthru
          _
      $region24: #{tpu_custom_call.1} parent=5 // pred_fallthru
        _
      %p236 = scmp.le.s32.totalorder 1, %s14
      %p237 = scmp.lt.s32.totalorder %s14, 3
      %p238 = pnand %p236, %p237
      %p239 = pneg %p238
      // Predicated region
      $region56: #{tpu_custom_call.1} parent=5 // pred_check
        _
      $region57: #{tpu_custom_call.1} parent=5 // pred_check_branch
        %241 = sbr.rel (%p238) target = $region59
      $region58: #{tpu_custom_call.1} parent=5 // pred_region
        %s242 = ssub.s32 %s14, 1
        %s243 = sand.u32 %s27, 1
        %s244 = sand.u32 %s27, 1
        %s245 = smul.addr %s244, 32
        %s246 = scalar_lea.vmem [#allocation2], %s245
        // Predicated region
        $region60: #{tpu_custom_call.1} parent=58 // pred_check
          %p247 = pneg %p40
        $region61: #{tpu_custom_call.1} parent=58 // pred_check_branch
          %249 = sbr.rel (%p247) target = $region63
        $region62: #{tpu_custom_call.1} parent=58 // pred_region
          _
        $region63: #{tpu_custom_call.1} parent=58 // pred_fallthru
          _
        %s250 = sand.u32 %s27, 1
        %s251 = sand.u32 %s27, 1
        %s252 = smul.addr %s251, 32
        %s253 = scalar_lea.vmem [#allocation2], %s252
        %p254 = pneg %p40
        %p255 = pneg %p37
        %s256 = smul.u32 2, %s19
        %p257 = scmp.lt.s32.totalorder %s256, 3
        %s258 = scalar_select %p257, %s256, 3
        %s259 = smul.addr %s258, 8
        %s260 = scalar_lea.vmem %s1, %s259
        %p261 = pneg %p66
        %p262 = pneg %p63
        %s263 = smul.u32 2, %s19
        %p264 = scmp.lt.s32.totalorder %s263, 3
        %s265 = scalar_select %p264, %s263, 3
        %s266 = smul.addr %s265, 8
        %s267 = scalar_lea.vmem %s2, %s266
        %p268 = pneg %p92
        %p269 = pneg %p89
        %p270 = pneg %p113
        %p271 = pneg %p110
        %p272 = pneg %p134
        %p273 = pneg %p131
        %p274 = pneg %p160
        %p275 = pneg %p157
        %s276 = sand.u32 %s147, 1
        %s277 = scalar_lea.sflag [#allocation4], %s276
        %s278 = sand.u32 %s147, 1
        %s279 = smul.addr %s278, 8
        %s280 = scalar_lea.vmem [#allocation3], %s279
        %s281 = smul.u32 2, %s19
        %s282 = smul.u32 2, %s19
        %p283 = scmp.lt.s32.totalorder %s282, 3
        %s284 = scalar_select %p283, %s282, 3
        %s285 = smul.addr %s284, 8
        %s286 = scalar_lea.vmem %s1, %s285
        %s287 = smul.u32 2, %s19
        %s288 = smul.u32 2, %s19
        %p289 = scmp.lt.s32.totalorder %s288, 3
        %s290 = scalar_select %p289, %s288, 3
        %s291 = smul.addr %s290, 8
        %s292 = scalar_lea.vmem %s2, %s291
        %s293 = smul.u32 2, %s19
        %s294 = smul.u32 2, %s19
        %v295 = vld [vmem:[%s246] sm:$0xff]
        %v296 = vld [vmem:[%s246 + $0x8] sm:$0xff]
        %v297 = vld [vmem:[%s246 + $0x10] sm:$0xff]
        %v298 = vld [vmem:[%s246 + $0x18] sm:$0xff]
        %v299 = vld [vmem:[%s286] sm:$0xff]
        %v300 = vld [vmem:[%s286 + $0x8] sm:$0xff]
        %v301 = vld [vmem:[%s292] sm:$0xff]
        %v302 = vld [vmem:[%s292 + $0x8] sm:$0xff]
        %v303 = vld [vmem:[%s3] sm:$0xff]
        %v304 = vld [vmem:[%s3 + $0x8] sm:$0xff]
        %v305 = vld [vmem:[%s3 + $0x10] sm:$0xff]
        %v306 = vld [vmem:[%s3 + $0x18] sm:$0xff]
        %v307 = vld [vmem:[%s3 + $0x20] sm:$0xff]
        %v308 = vld [vmem:[%s3 + $0x28] sm:$0xff]
        %v309 = vld [vmem:[%s3 + $0x30] sm:$0xff]
        %v310 = vld [vmem:[%s3 + $0x38] sm:$0xff]
        %vm311 = vcmask 64512
        %v313 = vsel %vm311, %v307, 0
        %v316 = vsel %vm311, %v308, 0
        %v319 = vsel %vm311, %v309, 0
        %v322 = vsel %vm311, %v310, 0
        %324 = vmatprep.subr.mxu0 0.0
        %325 = vmatpush1.msra.mxu0 0.0
        %326 = vmatprep.subr.mxu0 0.0
        %327 = vmatpush1.msra.mxu0 0.0
        %328 = vmatprep.subr.mxu0 0.0
        %329 = vmatpush1.msra.mxu0 0.0
        %330 = vmatprep.subr.mxu0 0.0
        %331 = vmatpush1.msra.mxu0 0.0
        %332 = vmatprep.subr.mxu0 0.0
        %333 = vmatpush1.msra.mxu0 0.0
        %334 = vmatprep.subr.mxu0 0.0
        %335 = vmatpush1.msra.mxu0 0.0
        %336 = vmatprep.subr.mxu0 0.0
        %337 = vmatpush1.msra.mxu0 0.0
        %338 = vmatprep.subr.mxu0 0.0
        %339 = vmatpush1.msra.mxu0 0.0
        %340 = vmatprep.subr.mxu0 0.0
        %341 = vmatpush1.msra.mxu0 0.0
        %342 = vmatprep.subr.mxu0 0.0
        %343 = vmatpush1.msra.mxu0 0.0
        %344 = vmatprep.subr.mxu0 0.0
        %345 = vmatpush1.msra.mxu0 0.0
        %346 = vmatprep.subr.mxu0 0.0
        %347 = vmatpush1.msra.mxu0 0.0
        %348 = vmatprep.subr.mxu0 0.0
        %349 = vmatpush1.msra.mxu0 0.0
        %350 = vmatprep.subr.mxu0 0.0
        %351 = vmatpush1.msra.mxu0 0.0
        %352 = vmatprep.subr.mxu0 0.0
        %353 = vmatpush1.msra.mxu0 0.0
        %354 = vmatprep.subr.mxu0 %v300
        %355 = vmatpush1.msra.mxu0 %v299
        %356 = vmatprep.subr.mxu0 0.0
        %357 = vmatpush2.msra.mxu0 0.0
        %358 = vmatprep.subr.mxu0 0.0
        %359 = vmatpush2.msra.mxu0 0.0
        %360 = vmatprep.subr.mxu0 0.0
        %361 = vmatpush2.msra.mxu0 0.0
        %362 = vmatprep.subr.mxu0 0.0
        %363 = vmatpush2.msra.mxu0 0.0
        %364 = vmatprep.subr.mxu0 0.0
        %365 = vmatpush2.msra.mxu0 0.0
        %366 = vmatprep.subr.mxu0 0.0
        %367 = vmatpush2.msra.mxu0 0.0
        %368 = vmatprep.subr.mxu0 0.0
        %369 = vmatpush2.msra.mxu0 0.0
        %370 = vmatprep.subr.mxu0 0.0
        %371 = vmatpush2.msra.mxu0 0.0
        %372 = vmatprep.subr.mxu0 0.0
        %373 = vmatpush2.msra.mxu0 0.0
        %374 = vmatprep.subr.mxu0 0.0
        %375 = vmatpush2.msra.mxu0 0.0
        %376 = vmatprep.subr.mxu0 0.0
        %377 = vmatpush2.msra.mxu0 0.0
        %378 = vmatprep.subr.mxu0 0.0
        %379 = vmatpush2.msra.mxu0 0.0
        %380 = vmatprep.subr.mxu0 0.0
        %381 = vmatpush2.msra.mxu0 0.0
        %382 = vmatprep.subr.mxu0 0.0
        %383 = vmatpush2.msra.mxu0 0.0
        %384 = vmatprep.subr.mxu0 0.0
        %385 = vmatpush2.msra.mxu0 0.0
        %386 = vmatprep.subr.mxu0 0.0
        %387 = vmatpush2.msra.mxu0 0.0
        %388 = vmatprep.mubr.f32.mxu0 0.0
        %389 = vmatmul.mubr.f32.gmra.mxu0 %v313
        %v390 = vpop.f32.mrf.mxu0
        %v391 = vadd.f32 0.0, %v390
        %v392 = vpop.f32.mrf.mxu0
        %v393 = vadd.f32 0.0, %v392
        %394 = vmatprep.mubr.f32.mxu0 0.0
        %395 = vmatmul.mubr.f32.gmra.mxu0 %v316
        %v396 = vpop.f32.mrf.mxu0
        %v397 = vadd.f32 0.0, %v396
        %v398 = vpop.f32.mrf.mxu0
        %v399 = vadd.f32 0.0, %v398
        %400 = vmatprep.mubr.f32.mxu0 0.0
        %401 = vmatmul.mubr.f32.gmra.mxu0 %v319
        %v402 = vpop.f32.mrf.mxu0
        %v403 = vadd.f32 0.0, %v402
        %v404 = vpop.f32.mrf.mxu0
        %v405 = vadd.f32 0.0, %v404
        %406 = vmatprep.mubr.f32.mxu0 0.0
        %407 = vmatmul.mubr.f32.gmra.mxu0 %v322
        %v408 = vpop.f32.mrf.mxu0
        %v409 = vadd.f32 0.0, %v408
        %v410 = vpop.f32.mrf.mxu0
        %v411 = vadd.f32 0.0, %v410
        %412 = vdwg.mxu0
        %vm413 = vcmask 130048
        %v415 = vsel %vm413, %v303, 0
        %v418 = vsel %vm413, %v304, 0
        %v421 = vsel %vm413, %v305, 0
        %v424 = vsel %vm413, %v306, 0
        %426 = vmatprep.subr.mxu0 0.0
        %427 = vmatpush1.msra.mxu0 0.0
        %428 = vmatprep.subr.mxu0 0.0
        %429 = vmatpush1.msra.mxu0 0.0
        %430 = vmatprep.subr.mxu0 0.0
        %431 = vmatpush1.msra.mxu0 0.0
        %432 = vmatprep.subr.mxu0 0.0
        %433 = vmatpush1.msra.mxu0 0.0
        %434 = vmatprep.subr.mxu0 0.0
        %435 = vmatpush1.msra.mxu0 0.0
        %436 = vmatprep.subr.mxu0 0.0
        %437 = vmatpush1.msra.mxu0 0.0
        %438 = vmatprep.subr.mxu0 0.0
        %439 = vmatpush1.msra.mxu0 0.0
        %440 = vmatprep.subr.mxu0 0.0
        %441 = vmatpush1.msra.mxu0 0.0
        %442 = vmatprep.subr.mxu0 0.0
        %443 = vmatpush1.msra.mxu0 0.0
        %444 = vmatprep.subr.mxu0 0.0
        %445 = vmatpush1.msra.mxu0 0.0
        %446 = vmatprep.subr.mxu0 0.0
        %447 = vmatpush1.msra.mxu0 0.0
        %448 = vmatprep.subr.mxu0 0.0
        %449 = vmatpush1.msra.mxu0 0.0
        %450 = vmatprep.subr.mxu0 0.0
        %451 = vmatpush1.msra.mxu0 0.0
        %452 = vmatprep.subr.mxu0 0.0
        %453 = vmatpush1.msra.mxu0 0.0
        %454 = vmatprep.subr.mxu0 %v298
        %455 = vmatpush1.msra.mxu0 %v297
        %456 = vmatprep.subr.mxu0 %v296
        %457 = vmatpush1.msra.mxu0 %v295
        %458 = vmatprep.subr.mxu0 0.0
        %459 = vmatpush2.msra.mxu0 0.0
        %460 = vmatprep.subr.mxu0 0.0
        %461 = vmatpush2.msra.mxu0 0.0
        %462 = vmatprep.subr.mxu0 0.0
        %463 = vmatpush2.msra.mxu0 0.0
        %464 = vmatprep.subr.mxu0 0.0
        %465 = vmatpush2.msra.mxu0 0.0
        %466 = vmatprep.subr.mxu0 0.0
        %467 = vmatpush2.msra.mxu0 0.0
        %468 = vmatprep.subr.mxu0 0.0
        %469 = vmatpush2.msra.mxu0 0.0
        %470 = vmatprep.subr.mxu0 0.0
        %471 = vmatpush2.msra.mxu0 0.0
        %472 = vmatprep.subr.mxu0 0.0
        %473 = vmatpush2.msra.mxu0 0.0
        %474 = vmatprep.subr.mxu0 0.0
        %475 = vmatpush2.msra.mxu0 0.0
        %476 = vmatprep.subr.mxu0 0.0
        %477 = vmatpush2.msra.mxu0 0.0
        %478 = vmatprep.subr.mxu0 0.0
        %479 = vmatpush2.msra.mxu0 0.0
        %480 = vmatprep.subr.mxu0 0.0
        %481 = vmatpush2.msra.mxu0 0.0
        %482 = vmatprep.subr.mxu0 0.0
        %483 = vmatpush2.msra.mxu0 0.0
        %484 = vmatprep.subr.mxu0 0.0
        %485 = vmatpush2.msra.mxu0 0.0
        %486 = vmatprep.subr.mxu0 0.0
        %487 = vmatpush2.msra.mxu0 0.0
        %488 = vmatprep.subr.mxu0 0.0
        %489 = vmatpush2.msra.mxu0 0.0
        %490 = vmatprep.mubr.f32.mxu0 0.0
        %491 = vmatmul.mubr.f32.gmra.mxu0 %v415
        %v492 = vpop.f32.mrf.mxu0
        %v493 = vadd.f32 %v391, %v492
        %v494 = vpop.f32.mrf.mxu0
        %v495 = vadd.f32 %v393, %v494
        %496 = vmatprep.mubr.f32.mxu0 0.0
        %497 = vmatmul.mubr.f32.gmra.mxu0 %v418
        %v498 = vpop.f32.mrf.mxu0
        %v499 = vadd.f32 %v397, %v498
        %v500 = vpop.f32.mrf.mxu0
        %v501 = vadd.f32 %v399, %v500
        %502 = vmatprep.mubr.f32.mxu0 0.0
        %503 = vmatmul.mubr.f32.gmra.mxu0 %v421
        %v504 = vpop.f32.mrf.mxu0
        %v505 = vadd.f32 %v403, %v504
        %v506 = vpop.f32.mrf.mxu0
        %v507 = vadd.f32 %v405, %v506
        %508 = vmatprep.mubr.f32.mxu0 0.0
        %509 = vmatmul.mubr.f32.gmra.mxu0 %v424
        %v510 = vpop.f32.mrf.mxu0
        %v511 = vadd.f32 %v409, %v510
        %v512 = vpop.f32.mrf.mxu0
        %v513 = vadd.f32 %v411, %v512
        %514 = vdwg.mxu0
        %v515 = vld [vmem:[%s4] sm:$0xff]
        %v516 = vld [vmem:[%s4 + $0x8] sm:$0xff]
        %v517 = vld [vmem:[%s4 + $0x10] sm:$0xff]
        %v518 = vld [vmem:[%s4 + $0x18] sm:$0xff]
        %520 = vset.pattern.permute.xlu0 0
        %521 = vperm.xlu0 %520, %v515
        %v522 = vpop.permute.xlu0 %521
        %525 = vset.pattern.permute.xlu0 0
        %526 = vperm.xlu0 %525, %v516
        %v527 = vpop.permute.xlu0 %526
        %530 = vset.pattern.permute.xlu0 0
        %531 = vperm.xlu0 %530, %v517
        %v532 = vpop.permute.xlu0 %531
        %535 = vset.pattern.permute.xlu0 0
        %536 = vperm.xlu0 %535, %v518
        %v537 = vpop.permute.xlu0 %536
        %v539 = vadd.f32 %v493, %v522
        %v540 = vadd.f32 %v495, %v522
        %v541 = vadd.f32 %v499, %v527
        %v542 = vadd.f32 %v501, %v527
        %v543 = vadd.f32 %v505, %v532
        %v544 = vadd.f32 %v507, %v532
        %v545 = vadd.f32 %v511, %v537
        %v546 = vadd.f32 %v513, %v537
        %v547 = vmax.f32 %v539, 0.0
        %v548 = vmax.f32 %v540, 0.0
        %v549 = vmax.f32 %v541, 0.0
        %v550 = vmax.f32 %v542, 0.0
        %v551 = vmax.f32 %v543, 0.0
        %v552 = vmax.f32 %v544, 0.0
        %v553 = vmax.f32 %v545, 0.0
        %v554 = vmax.f32 %v546, 0.0
        %v555 = vld [vmem:[%s3 + $0x40] sm:$0xff]
        %v556 = vld [vmem:[%s3 + $0x48] sm:$0xff]
        %v557 = vld [vmem:[%s3 + $0x50] sm:$0xff]
        %v558 = vld [vmem:[%s3 + $0x58] sm:$0xff]
        %559 = vset.pattern.permute.xlu0 1
        %560 = vperm.xlu0 %559, %v515
        %v561 = vpop.permute.xlu0 %560
        %563 = vset.pattern.permute.xlu0 1
        %564 = vperm.xlu0 %563, %v516
        %v565 = vpop.permute.xlu0 %564
        %567 = vset.pattern.permute.xlu0 1
        %568 = vperm.xlu0 %567, %v517
        %v569 = vpop.permute.xlu0 %568
        %571 = vset.pattern.permute.xlu0 1
        %572 = vperm.xlu0 %571, %v518
        %v573 = vpop.permute.xlu0 %572
        %vm575 = vcmask 261120
        %v577 = vsel %vm575, %v555, 0
        %v580 = vsel %vm575, %v556, 0
        %v583 = vsel %vm575, %v557, 0
        %v586 = vsel %vm575, %v558, 0
        %588 = vmatprep.subr.mxu0 0.0
        %589 = vmatpush1.msra.mxu0 0.0
        %590 = vmatprep.subr.mxu0 0.0
        %591 = vmatpush1.msra.mxu0 0.0
        %592 = vmatprep.subr.mxu0 0.0
        %593 = vmatpush1.msra.mxu0 0.0
        %594 = vmatprep.subr.mxu0 0.0
        %595 = vmatpush1.msra.mxu0 0.0
        %596 = vmatprep.subr.mxu0 0.0
        %597 = vmatpush1.msra.mxu0 0.0
        %598 = vmatprep.subr.mxu0 0.0
        %599 = vmatpush1.msra.mxu0 0.0
        %600 = vmatprep.subr.mxu0 0.0
        %601 = vmatpush1.msra.mxu0 0.0
        %602 = vmatprep.subr.mxu0 0.0
        %603 = vmatpush1.msra.mxu0 0.0
        %604 = vmatprep.subr.mxu0 0.0
        %605 = vmatpush1.msra.mxu0 0.0
        %606 = vmatprep.subr.mxu0 0.0
        %607 = vmatpush1.msra.mxu0 0.0
        %608 = vmatprep.subr.mxu0 0.0
        %609 = vmatpush1.msra.mxu0 0.0
        %610 = vmatprep.subr.mxu0 0.0
        %611 = vmatpush1.msra.mxu0 0.0
        %612 = vmatprep.subr.mxu0 %v554
        %613 = vmatpush1.msra.mxu0 %v553
        %614 = vmatprep.subr.mxu0 %v552
        %615 = vmatpush1.msra.mxu0 %v551
        %616 = vmatprep.subr.mxu0 %v550
        %617 = vmatpush1.msra.mxu0 %v549
        %618 = vmatprep.subr.mxu0 %v548
        %619 = vmatpush1.msra.mxu0 %v547
        %620 = vmatprep.subr.mxu0 0.0
        %621 = vmatpush2.msra.mxu0 0.0
        %622 = vmatprep.subr.mxu0 0.0
        %623 = vmatpush2.msra.mxu0 0.0
        %624 = vmatprep.subr.mxu0 0.0
        %625 = vmatpush2.msra.mxu0 0.0
        %626 = vmatprep.subr.mxu0 0.0
        %627 = vmatpush2.msra.mxu0 0.0
        %628 = vmatprep.subr.mxu0 0.0
        %629 = vmatpush2.msra.mxu0 0.0
        %630 = vmatprep.subr.mxu0 0.0
        %631 = vmatpush2.msra.mxu0 0.0
        %632 = vmatprep.subr.mxu0 0.0
        %633 = vmatpush2.msra.mxu0 0.0
        %634 = vmatprep.subr.mxu0 0.0
        %635 = vmatpush2.msra.mxu0 0.0
        %636 = vmatprep.subr.mxu0 0.0
        %637 = vmatpush2.msra.mxu0 0.0
        %638 = vmatprep.subr.mxu0 0.0
        %639 = vmatpush2.msra.mxu0 0.0
        %640 = vmatprep.subr.mxu0 0.0
        %641 = vmatpush2.msra.mxu0 0.0
        %642 = vmatprep.subr.mxu0 0.0
        %643 = vmatpush2.msra.mxu0 0.0
        %644 = vmatprep.subr.mxu0 0.0
        %645 = vmatpush2.msra.mxu0 0.0
        %646 = vmatprep.subr.mxu0 0.0
        %647 = vmatpush2.msra.mxu0 0.0
        %648 = vmatprep.subr.mxu0 0.0
        %649 = vmatpush2.msra.mxu0 0.0
        %650 = vmatprep.subr.mxu0 0.0
        %651 = vmatpush2.msra.mxu0 0.0
        %652 = vmatprep.mubr.f32.mxu0 0.0
        %653 = vmatmul.mubr.f32.gmra.mxu0 %v577
        %v654 = vpop.f32.mrf.mxu0
        %v655 = vadd.f32 %v561, %v654
        %v656 = vpop.f32.mrf.mxu0
        %v657 = vadd.f32 %v561, %v656
        %658 = vmatprep.mubr.f32.mxu0 0.0
        %659 = vmatmul.mubr.f32.gmra.mxu0 %v580
        %v660 = vpop.f32.mrf.mxu0
        %v661 = vadd.f32 %v565, %v660
        %v662 = vpop.f32.mrf.mxu0
        %v663 = vadd.f32 %v565, %v662
        %664 = vmatprep.mubr.f32.mxu0 0.0
        %665 = vmatmul.mubr.f32.gmra.mxu0 %v583
        %v666 = vpop.f32.mrf.mxu0
        %v667 = vadd.f32 %v569, %v666
        %v668 = vpop.f32.mrf.mxu0
        %v669 = vadd.f32 %v569, %v668
        %670 = vmatprep.mubr.f32.mxu0 0.0
        %671 = vmatmul.mubr.f32.gmra.mxu0 %v586
        %v672 = vpop.f32.mrf.mxu0
        %v673 = vadd.f32 %v573, %v672
        %v674 = vpop.f32.mrf.mxu0
        %v675 = vadd.f32 %v573, %v674
        %676 = vdwg.mxu0
        %v677 = vmax.f32 %v655, 0.0
        %v678 = vmax.f32 %v657, 0.0
        %v679 = vmax.f32 %v661, 0.0
        %v680 = vmax.f32 %v663, 0.0
        %v681 = vmax.f32 %v667, 0.0
        %v682 = vmax.f32 %v669, 0.0
        %v683 = vmax.f32 %v673, 0.0
        %v684 = vmax.f32 %v675, 0.0
        %v685 = vld [vmem:[%s3 + $0x60] sm:$0xff]
        %v686 = vld [vmem:[%s3 + $0x68] sm:$0xff]
        %v687 = vld [vmem:[%s4] sm:$0xff]
        %v688 = vld [vmem:[%s4 + $0x8] sm:$0xff]
        %690 = vset.pattern.permute.xlu0 2
        %691 = vperm.xlu0 %690, %v687
        %v692 = vpop.permute.xlu0 %691
        %695 = vset.pattern.permute.xlu0 2
        %696 = vperm.xlu0 %695, %v688
        %v697 = vpop.permute.xlu0 %696
        %v700 = vsel %vm575, %v685, 0
        %v703 = vsel %vm575, %v686, 0
        %705 = vmatprep.subr.mxu0 0.0
        %706 = vmatpush1.msra.mxu0 0.0
        %707 = vmatprep.subr.mxu0 0.0
        %708 = vmatpush1.msra.mxu0 0.0
        %709 = vmatprep.subr.mxu0 0.0
        %710 = vmatpush1.msra.mxu0 0.0
        %711 = vmatprep.subr.mxu0 0.0
        %712 = vmatpush1.msra.mxu0 0.0
        %713 = vmatprep.subr.mxu0 0.0
        %714 = vmatpush1.msra.mxu0 0.0
        %715 = vmatprep.subr.mxu0 0.0
        %716 = vmatpush1.msra.mxu0 0.0
        %717 = vmatprep.subr.mxu0 0.0
        %718 = vmatpush1.msra.mxu0 0.0
        %719 = vmatprep.subr.mxu0 0.0
        %720 = vmatpush1.msra.mxu0 0.0
        %721 = vmatprep.subr.mxu0 0.0
        %722 = vmatpush1.msra.mxu0 0.0
        %723 = vmatprep.subr.mxu0 0.0
        %724 = vmatpush1.msra.mxu0 0.0
        %725 = vmatprep.subr.mxu0 0.0
        %726 = vmatpush1.msra.mxu0 0.0
        %727 = vmatprep.subr.mxu0 0.0
        %728 = vmatpush1.msra.mxu0 0.0
        %729 = vmatprep.subr.mxu0 %v684
        %730 = vmatpush1.msra.mxu0 %v683
        %731 = vmatprep.subr.mxu0 %v682
        %732 = vmatpush1.msra.mxu0 %v681
        %733 = vmatprep.subr.mxu0 %v680
        %734 = vmatpush1.msra.mxu0 %v679
        %735 = vmatprep.subr.mxu0 %v678
        %736 = vmatpush1.msra.mxu0 %v677
        %737 = vmatprep.subr.mxu0 0.0
        %738 = vmatpush2.msra.mxu0 0.0
        %739 = vmatprep.subr.mxu0 0.0
        %740 = vmatpush2.msra.mxu0 0.0
        %741 = vmatprep.subr.mxu0 0.0
        %742 = vmatpush2.msra.mxu0 0.0
        %743 = vmatprep.subr.mxu0 0.0
        %744 = vmatpush2.msra.mxu0 0.0
        %745 = vmatprep.subr.mxu0 0.0
        %746 = vmatpush2.msra.mxu0 0.0
        %747 = vmatprep.subr.mxu0 0.0
        %748 = vmatpush2.msra.mxu0 0.0
        %749 = vmatprep.subr.mxu0 0.0
        %750 = vmatpush2.msra.mxu0 0.0
        %751 = vmatprep.subr.mxu0 0.0
        %752 = vmatpush2.msra.mxu0 0.0
        %753 = vmatprep.subr.mxu0 0.0
        %754 = vmatpush2.msra.mxu0 0.0
        %755 = vmatprep.subr.mxu0 0.0
        %756 = vmatpush2.msra.mxu0 0.0
        %757 = vmatprep.subr.mxu0 0.0
        %758 = vmatpush2.msra.mxu0 0.0
        %759 = vmatprep.subr.mxu0 0.0
        %760 = vmatpush2.msra.mxu0 0.0
        %761 = vmatprep.subr.mxu0 0.0
        %762 = vmatpush2.msra.mxu0 0.0
        %763 = vmatprep.subr.mxu0 0.0
        %764 = vmatpush2.msra.mxu0 0.0
        %765 = vmatprep.subr.mxu0 0.0
        %766 = vmatpush2.msra.mxu0 0.0
        %767 = vmatprep.subr.mxu0 0.0
        %768 = vmatpush2.msra.mxu0 0.0
        %769 = vmatprep.mubr.f32.mxu0 0.0
        %770 = vmatmul.mubr.f32.gmra.mxu0 %v700
        %v771 = vpop.f32.mrf.mxu0
        %v772 = vadd.f32 %v692, %v771
        %v773 = vpop.f32.mrf.mxu0
        %v774 = vadd.f32 %v692, %v773
        %775 = vmatprep.mubr.f32.mxu0 0.0
        %776 = vmatmul.mubr.f32.gmra.mxu0 %v703
        %v777 = vpop.f32.mrf.mxu0
        %v778 = vadd.f32 %v697, %v777
        %v779 = vpop.f32.mrf.mxu0
        %v780 = vadd.f32 %v697, %v779
        %781 = vdwg.mxu0
        %v782 = vmax.f32 %v778, -20.0
        %v783 = vmax.f32 %v780, -20.0
        %v784 = vmin.f32 %v782, 2.0
        %v785 = vmin.f32 %v783, 2.0
        %v786 = vmul.f32 %v784, 1.442695
        %v787 = vpow.pop %v786
        %v788 = vmul.f32 %v785, 1.442695
        %v789 = vpow.pop %v788
        %v790 = vmul.f32 %v787, %v301
        %v791 = vmul.f32 %v789, %v302
        %v792 = vadd.f32 %v772, %v790
        %v793 = vadd.f32 %v774, %v791
        %v794 = vld [vmem:[%s3 + $0x80] sm:$0xff]
        %v795 = vld [vmem:[%s3 + $0x88] sm:$0xff]
        %v796 = vld [vmem:[%s3 + $0x90] sm:$0xff]
        %v797 = vld [vmem:[%s3 + $0x98] sm:$0xff]
        %v798 = vld [vmem:[%s3 + $0xa0] sm:$0xff]
        %v799 = vld [vmem:[%s3 + $0xa8] sm:$0xff]
        %v800 = vld [vmem:[%s3 + $0xb0] sm:$0xff]
        %v801 = vld [vmem:[%s3 + $0xb8] sm:$0xff]
        %v803 = vsel %vm311, %v798, 0
        %v806 = vsel %vm311, %v799, 0
        %v809 = vsel %vm311, %v800, 0
        %v812 = vsel %vm311, %v801, 0
        %814 = vmatprep.subr.mxu0 0.0
        %815 = vmatpush1.msra.mxu0 0.0
        %816 = vmatprep.subr.mxu0 0.0
        %817 = vmatpush1.msra.mxu0 0.0
        %818 = vmatprep.subr.mxu0 0.0
        %819 = vmatpush1.msra.mxu0 0.0
        %820 = vmatprep.subr.mxu0 0.0
        %821 = vmatpush1.msra.mxu0 0.0
        %822 = vmatprep.subr.mxu0 0.0
        %823 = vmatpush1.msra.mxu0 0.0
        %824 = vmatprep.subr.mxu0 0.0
        %825 = vmatpush1.msra.mxu0 0.0
        %826 = vmatprep.subr.mxu0 0.0
        %827 = vmatpush1.msra.mxu0 0.0
        %828 = vmatprep.subr.mxu0 0.0
        %829 = vmatpush1.msra.mxu0 0.0
        %830 = vmatprep.subr.mxu0 0.0
        %831 = vmatpush1.msra.mxu0 0.0
        %832 = vmatprep.subr.mxu0 0.0
        %833 = vmatpush1.msra.mxu0 0.0
        %834 = vmatprep.subr.mxu0 0.0
        %835 = vmatpush1.msra.mxu0 0.0
        %836 = vmatprep.subr.mxu0 0.0
        %837 = vmatpush1.msra.mxu0 0.0
        %838 = vmatprep.subr.mxu0 0.0
        %839 = vmatpush1.msra.mxu0 0.0
        %840 = vmatprep.subr.mxu0 0.0
        %841 = vmatpush1.msra.mxu0 0.0
        %842 = vmatprep.subr.mxu0 0.0
        %843 = vmatpush1.msra.mxu0 0.0
        %844 = vmatprep.subr.mxu0 %v793
        %845 = vmatpush1.msra.mxu0 %v792
        %846 = vmatprep.subr.mxu0 0.0
        %847 = vmatpush2.msra.mxu0 0.0
        %848 = vmatprep.subr.mxu0 0.0
        %849 = vmatpush2.msra.mxu0 0.0
        %850 = vmatprep.subr.mxu0 0.0
        %851 = vmatpush2.msra.mxu0 0.0
        %852 = vmatprep.subr.mxu0 0.0
        %853 = vmatpush2.msra.mxu0 0.0
        %854 = vmatprep.subr.mxu0 0.0
        %855 = vmatpush2.msra.mxu0 0.0
        %856 = vmatprep.subr.mxu0 0.0
        %857 = vmatpush2.msra.mxu0 0.0
        %858 = vmatprep.subr.mxu0 0.0
        %859 = vmatpush2.msra.mxu0 0.0
        %860 = vmatprep.subr.mxu0 0.0
        %861 = vmatpush2.msra.mxu0 0.0
        %862 = vmatprep.subr.mxu0 0.0
        %863 = vmatpush2.msra.mxu0 0.0
        %864 = vmatprep.subr.mxu0 0.0
        %865 = vmatpush2.msra.mxu0 0.0
        %866 = vmatprep.subr.mxu0 0.0
        %867 = vmatpush2.msra.mxu0 0.0
        %868 = vmatprep.subr.mxu0 0.0
        %869 = vmatpush2.msra.mxu0 0.0
        %870 = vmatprep.subr.mxu0 0.0
        %871 = vmatpush2.msra.mxu0 0.0
        %872 = vmatprep.subr.mxu0 0.0
        %873 = vmatpush2.msra.mxu0 0.0
        %874 = vmatprep.subr.mxu0 0.0
        %875 = vmatpush2.msra.mxu0 0.0
        %876 = vmatprep.subr.mxu0 0.0
        %877 = vmatpush2.msra.mxu0 0.0
        %878 = vmatprep.mubr.f32.mxu0 0.0
        %879 = vmatmul.mubr.f32.gmra.mxu0 %v803
        %v880 = vpop.f32.mrf.mxu0
        %v881 = vadd.f32 0.0, %v880
        %v882 = vpop.f32.mrf.mxu0
        %v883 = vadd.f32 0.0, %v882
        %884 = vmatprep.mubr.f32.mxu0 0.0
        %885 = vmatmul.mubr.f32.gmra.mxu0 %v806
        %v886 = vpop.f32.mrf.mxu0
        %v887 = vadd.f32 0.0, %v886
        %v888 = vpop.f32.mrf.mxu0
        %v889 = vadd.f32 0.0, %v888
        %890 = vmatprep.mubr.f32.mxu0 0.0
        %891 = vmatmul.mubr.f32.gmra.mxu0 %v809
        %v892 = vpop.f32.mrf.mxu0
        %v893 = vadd.f32 0.0, %v892
        %v894 = vpop.f32.mrf.mxu0
        %v895 = vadd.f32 0.0, %v894
        %896 = vmatprep.mubr.f32.mxu0 0.0
        %897 = vmatmul.mubr.f32.gmra.mxu0 %v812
        %v898 = vpop.f32.mrf.mxu0
        %v899 = vadd.f32 0.0, %v898
        %v900 = vpop.f32.mrf.mxu0
        %v901 = vadd.f32 0.0, %v900
        %902 = vdwg.mxu0
        %v904 = vsel %vm413, %v794, 0
        %v907 = vsel %vm413, %v795, 0
        %v910 = vsel %vm413, %v796, 0
        %v913 = vsel %vm413, %v797, 0
        %915 = vmatprep.subr.mxu0 0.0
        %916 = vmatpush1.msra.mxu0 0.0
        %917 = vmatprep.subr.mxu0 0.0
        %918 = vmatpush1.msra.mxu0 0.0
        %919 = vmatprep.subr.mxu0 0.0
        %920 = vmatpush1.msra.mxu0 0.0
        %921 = vmatprep.subr.mxu0 0.0
        %922 = vmatpush1.msra.mxu0 0.0
        %923 = vmatprep.subr.mxu0 0.0
        %924 = vmatpush1.msra.mxu0 0.0
        %925 = vmatprep.subr.mxu0 0.0
        %926 = vmatpush1.msra.mxu0 0.0
        %927 = vmatprep.subr.mxu0 0.0
        %928 = vmatpush1.msra.mxu0 0.0
        %929 = vmatprep.subr.mxu0 0.0
        %930 = vmatpush1.msra.mxu0 0.0
        %931 = vmatprep.subr.mxu0 0.0
        %932 = vmatpush1.msra.mxu0 0.0
        %933 = vmatprep.subr.mxu0 0.0
        %934 = vmatpush1.msra.mxu0 0.0
        %935 = vmatprep.subr.mxu0 0.0
        %936 = vmatpush1.msra.mxu0 0.0
        %937 = vmatprep.subr.mxu0 0.0
        %938 = vmatpush1.msra.mxu0 0.0
        %939 = vmatprep.subr.mxu0 0.0
        %940 = vmatpush1.msra.mxu0 0.0
        %941 = vmatprep.subr.mxu0 0.0
        %942 = vmatpush1.msra.mxu0 0.0
        %943 = vmatprep.subr.mxu0 %v298
        %944 = vmatpush1.msra.mxu0 %v297
        %945 = vmatprep.subr.mxu0 %v296
        %946 = vmatpush1.msra.mxu0 %v295
        %947 = vmatprep.subr.mxu0 0.0
        %948 = vmatpush2.msra.mxu0 0.0
        %949 = vmatprep.subr.mxu0 0.0
        %950 = vmatpush2.msra.mxu0 0.0
        %951 = vmatprep.subr.mxu0 0.0
        %952 = vmatpush2.msra.mxu0 0.0
        %953 = vmatprep.subr.mxu0 0.0
        %954 = vmatpush2.msra.mxu0 0.0
        %955 = vmatprep.subr.mxu0 0.0
        %956 = vmatpush2.msra.mxu0 0.0
        %957 = vmatprep.subr.mxu0 0.0
        %958 = vmatpush2.msra.mxu0 0.0
        %959 = vmatprep.subr.mxu0 0.0
        %960 = vmatpush2.msra.mxu0 0.0
        %961 = vmatprep.subr.mxu0 0.0
        %962 = vmatpush2.msra.mxu0 0.0
        %963 = vmatprep.subr.mxu0 0.0
        %964 = vmatpush2.msra.mxu0 0.0
        %965 = vmatprep.subr.mxu0 0.0
        %966 = vmatpush2.msra.mxu0 0.0
        %967 = vmatprep.subr.mxu0 0.0
        %968 = vmatpush2.msra.mxu0 0.0
        %969 = vmatprep.subr.mxu0 0.0
        %970 = vmatpush2.msra.mxu0 0.0
        %971 = vmatprep.subr.mxu0 0.0
        %972 = vmatpush2.msra.mxu0 0.0
        %973 = vmatprep.subr.mxu0 0.0
        %974 = vmatpush2.msra.mxu0 0.0
        %975 = vmatprep.subr.mxu0 0.0
        %976 = vmatpush2.msra.mxu0 0.0
        %977 = vmatprep.subr.mxu0 0.0
        %978 = vmatpush2.msra.mxu0 0.0
        %979 = vmatprep.mubr.f32.mxu0 0.0
        %980 = vmatmul.mubr.f32.gmra.mxu0 %v904
        %v981 = vpop.f32.mrf.mxu0
        %v982 = vadd.f32 %v881, %v981
        %v983 = vpop.f32.mrf.mxu0
        %v984 = vadd.f32 %v883, %v983
        %985 = vmatprep.mubr.f32.mxu0 0.0
        %986 = vmatmul.mubr.f32.gmra.mxu0 %v907
        %v987 = vpop.f32.mrf.mxu0
        %v988 = vadd.f32 %v887, %v987
        %v989 = vpop.f32.mrf.mxu0
        %v990 = vadd.f32 %v889, %v989
        %991 = vmatprep.mubr.f32.mxu0 0.0
        %992 = vmatmul.mubr.f32.gmra.mxu0 %v910
        %v993 = vpop.f32.mrf.mxu0
        %v994 = vadd.f32 %v893, %v993
        %v995 = vpop.f32.mrf.mxu0
        %v996 = vadd.f32 %v895, %v995
        %997 = vmatprep.mubr.f32.mxu0 0.0
        %998 = vmatmul.mubr.f32.gmra.mxu0 %v913
        %v999 = vpop.f32.mrf.mxu0
        %v1000 = vadd.f32 %v899, %v999
        %v1001 = vpop.f32.mrf.mxu0
        %v1002 = vadd.f32 %v901, %v1001
        %1003 = vdwg.mxu0
        %1004 = vset.pattern.permute.xlu0 3
        %1005 = vperm.xlu0 %1004, %v515
        %v1006 = vpop.permute.xlu0 %1005
        %1008 = vset.pattern.permute.xlu0 3
        %1009 = vperm.xlu0 %1008, %v516
        %v1010 = vpop.permute.xlu0 %1009
        %1012 = vset.pattern.permute.xlu0 3
        %1013 = vperm.xlu0 %1012, %v517
        %v1014 = vpop.permute.xlu0 %1013
        %1016 = vset.pattern.permute.xlu0 3
        %1017 = vperm.xlu0 %1016, %v518
        %v1018 = vpop.permute.xlu0 %1017
        %v1020 = vadd.f32 %v982, %v1006
        %v1021 = vadd.f32 %v984, %v1006
        %v1022 = vadd.f32 %v988, %v1010
        %v1023 = vadd.f32 %v990, %v1010
        %v1024 = vadd.f32 %v994, %v1014
        %v1025 = vadd.f32 %v996, %v1014
        %v1026 = vadd.f32 %v1000, %v1018
        %v1027 = vadd.f32 %v1002, %v1018
        %v1028 = vmax.f32 %v1020, 0.0
        %v1029 = vmax.f32 %v1021, 0.0
        %v1030 = vmax.f32 %v1022, 0.0
        %v1031 = vmax.f32 %v1023, 0.0
        %v1032 = vmax.f32 %v1024, 0.0
        %v1033 = vmax.f32 %v1025, 0.0
        %v1034 = vmax.f32 %v1026, 0.0
        %v1035 = vmax.f32 %v1027, 0.0
        %v1036 = vld [vmem:[%s3 + $0xc0] sm:$0xff]
        %v1037 = vld [vmem:[%s3 + $0xc8] sm:$0xff]
        %v1038 = vld [vmem:[%s3 + $0xd0] sm:$0xff]
        %v1039 = vld [vmem:[%s3 + $0xd8] sm:$0xff]
        %1040 = vset.pattern.permute.xlu0 4
        %1041 = vperm.xlu0 %1040, %v515
        %v1042 = vpop.permute.xlu0 %1041
        %1044 = vset.pattern.permute.xlu0 4
        %1045 = vperm.xlu0 %1044, %v516
        %v1046 = vpop.permute.xlu0 %1045
        %1048 = vset.pattern.permute.xlu0 4
        %1049 = vperm.xlu0 %1048, %v517
        %v1050 = vpop.permute.xlu0 %1049
        %1052 = vset.pattern.permute.xlu0 4
        %1053 = vperm.xlu0 %1052, %v518
        %v1054 = vpop.permute.xlu0 %1053
        %v1057 = vsel %vm575, %v1036, 0
        %v1060 = vsel %vm575, %v1037, 0
        %v1063 = vsel %vm575, %v1038, 0
        %v1066 = vsel %vm575, %v1039, 0
        %1068 = vmatprep.subr.mxu0 0.0
        %1069 = vmatpush1.msra.mxu0 0.0
        %1070 = vmatprep.subr.mxu0 0.0
        %1071 = vmatpush1.msra.mxu0 0.0
        %1072 = vmatprep.subr.mxu0 0.0
        %1073 = vmatpush1.msra.mxu0 0.0
        %1074 = vmatprep.subr.mxu0 0.0
        %1075 = vmatpush1.msra.mxu0 0.0
        %1076 = vmatprep.subr.mxu0 0.0
        %1077 = vmatpush1.msra.mxu0 0.0
        %1078 = vmatprep.subr.mxu0 0.0
        %1079 = vmatpush1.msra.mxu0 0.0
        %1080 = vmatprep.subr.mxu0 0.0
        %1081 = vmatpush1.msra.mxu0 0.0
        %1082 = vmatprep.subr.mxu0 0.0
        %1083 = vmatpush1.msra.mxu0 0.0
        %1084 = vmatprep.subr.mxu0 0.0
        %1085 = vmatpush1.msra.mxu0 0.0
        %1086 = vmatprep.subr.mxu0 0.0
        %1087 = vmatpush1.msra.mxu0 0.0
        %1088 = vmatprep.subr.mxu0 0.0
        %1089 = vmatpush1.msra.mxu0 0.0
        %1090 = vmatprep.subr.mxu0 0.0
        %1091 = vmatpush1.msra.mxu0 0.0
        %1092 = vmatprep.subr.mxu0 %v1035
        %1093 = vmatpush1.msra.mxu0 %v1034
        %1094 = vmatprep.subr.mxu0 %v1033
        %1095 = vmatpush1.msra.mxu0 %v1032
        %1096 = vmatprep.subr.mxu0 %v1031
        %1097 = vmatpush1.msra.mxu0 %v1030
        %1098 = vmatprep.subr.mxu0 %v1029
        %1099 = vmatpush1.msra.mxu0 %v1028
        %1100 = vmatprep.subr.mxu0 0.0
        %1101 = vmatpush2.msra.mxu0 0.0
        %1102 = vmatprep.subr.mxu0 0.0
        %1103 = vmatpush2.msra.mxu0 0.0
        %1104 = vmatprep.subr.mxu0 0.0
        %1105 = vmatpush2.msra.mxu0 0.0
        %1106 = vmatprep.subr.mxu0 0.0
        %1107 = vmatpush2.msra.mxu0 0.0
        %1108 = vmatprep.subr.mxu0 0.0
        %1109 = vmatpush2.msra.mxu0 0.0
        %1110 = vmatprep.subr.mxu0 0.0
        %1111 = vmatpush2.msra.mxu0 0.0
        %1112 = vmatprep.subr.mxu0 0.0
        %1113 = vmatpush2.msra.mxu0 0.0
        %1114 = vmatprep.subr.mxu0 0.0
        %1115 = vmatpush2.msra.mxu0 0.0
        %1116 = vmatprep.subr.mxu0 0.0
        %1117 = vmatpush2.msra.mxu0 0.0
        %1118 = vmatprep.subr.mxu0 0.0
        %1119 = vmatpush2.msra.mxu0 0.0
        %1120 = vmatprep.subr.mxu0 0.0
        %1121 = vmatpush2.msra.mxu0 0.0
        %1122 = vmatprep.subr.mxu0 0.0
        %1123 = vmatpush2.msra.mxu0 0.0
        %1124 = vmatprep.subr.mxu0 0.0
        %1125 = vmatpush2.msra.mxu0 0.0
        %1126 = vmatprep.subr.mxu0 0.0
        %1127 = vmatpush2.msra.mxu0 0.0
        %1128 = vmatprep.subr.mxu0 0.0
        %1129 = vmatpush2.msra.mxu0 0.0
        %1130 = vmatprep.subr.mxu0 0.0
        %1131 = vmatpush2.msra.mxu0 0.0
        %1132 = vmatprep.mubr.f32.mxu0 0.0
        %1133 = vmatmul.mubr.f32.gmra.mxu0 %v1057
        %v1134 = vpop.f32.mrf.mxu0
        %v1135 = vadd.f32 %v1042, %v1134
        %v1136 = vpop.f32.mrf.mxu0
        %v1137 = vadd.f32 %v1042, %v1136
        %1138 = vmatprep.mubr.f32.mxu0 0.0
        %1139 = vmatmul.mubr.f32.gmra.mxu0 %v1060
        %v1140 = vpop.f32.mrf.mxu0
        %v1141 = vadd.f32 %v1046, %v1140
        %v1142 = vpop.f32.mrf.mxu0
        %v1143 = vadd.f32 %v1046, %v1142
        %1144 = vmatprep.mubr.f32.mxu0 0.0
        %1145 = vmatmul.mubr.f32.gmra.mxu0 %v1063
        %v1146 = vpop.f32.mrf.mxu0
        %v1147 = vadd.f32 %v1050, %v1146
        %v1148 = vpop.f32.mrf.mxu0
        %v1149 = vadd.f32 %v1050, %v1148
        %1150 = vmatprep.mubr.f32.mxu0 0.0
        %1151 = vmatmul.mubr.f32.gmra.mxu0 %v1066
        %v1152 = vpop.f32.mrf.mxu0
        %v1153 = vadd.f32 %v1054, %v1152
        %v1154 = vpop.f32.mrf.mxu0
        %v1155 = vadd.f32 %v1054, %v1154
        %1156 = vdwg.mxu0
        %v1157 = vmax.f32 %v1135, 0.0
        %v1158 = vmax.f32 %v1137, 0.0
        %v1159 = vmax.f32 %v1141, 0.0
        %v1160 = vmax.f32 %v1143, 0.0
        %v1161 = vmax.f32 %v1147, 0.0
        %v1162 = vmax.f32 %v1149, 0.0
        %v1163 = vmax.f32 %v1153, 0.0
        %v1164 = vmax.f32 %v1155, 0.0
        %v1165 = vld [vmem:[%s3 + $0xe0] sm:$0xff]
        %v1166 = vld [vmem:[%s3 + $0xe8] sm:$0xff]
        %v1167 = vld [vmem:[%s3 + $0xf0] sm:$0xff]
        %v1168 = vld [vmem:[%s3 + $0xf8] sm:$0xff]
        %1169 = vset.pattern.permute.xlu0 5
        %1170 = vperm.xlu0 %1169, %v515
        %v1171 = vpop.permute.xlu0 %1170
        %1173 = vset.pattern.permute.xlu0 5
        %1174 = vperm.xlu0 %1173, %v516
        %v1175 = vpop.permute.xlu0 %1174
        %1176 = vset.pattern.permute.xlu0 5
        %1177 = vperm.xlu0 %1176, %v517
        %v1178 = vpop.permute.xlu0 %1177
        %1179 = vset.pattern.permute.xlu0 5
        %1180 = vperm.xlu0 %1179, %v518
        %v1181 = vpop.permute.xlu0 %1180
        %v1183 = vsel %vm575, %v1165, 0
        %v1186 = vsel %vm575, %v1166, 0
        %v1189 = vsel %vm575, %v1167, 0
        %v1192 = vsel %vm575, %v1168, 0
        %1194 = vmatprep.subr.mxu0 0.0
        %1195 = vmatpush1.msra.mxu0 0.0
        %1196 = vmatprep.subr.mxu0 0.0
        %1197 = vmatpush1.msra.mxu0 0.0
        %1198 = vmatprep.subr.mxu0 0.0
        %1199 = vmatpush1.msra.mxu0 0.0
        %1200 = vmatprep.subr.mxu0 0.0
        %1201 = vmatpush1.msra.mxu0 0.0
        %1202 = vmatprep.subr.mxu0 0.0
        %1203 = vmatpush1.msra.mxu0 0.0
        %1204 = vmatprep.subr.mxu0 0.0
        %1205 = vmatpush1.msra.mxu0 0.0
        %1206 = vmatprep.subr.mxu0 0.0
        %1207 = vmatpush1.msra.mxu0 0.0
        %1208 = vmatprep.subr.mxu0 0.0
        %1209 = vmatpush1.msra.mxu0 0.0
        %1210 = vmatprep.subr.mxu0 0.0
        %1211 = vmatpush1.msra.mxu0 0.0
        %1212 = vmatprep.subr.mxu0 0.0
        %1213 = vmatpush1.msra.mxu0 0.0
        %1214 = vmatprep.subr.mxu0 0.0
        %1215 = vmatpush1.msra.mxu0 0.0
        %1216 = vmatprep.subr.mxu0 0.0
        %1217 = vmatpush1.msra.mxu0 0.0
        %1218 = vmatprep.subr.mxu0 %v1164
        %1219 = vmatpush1.msra.mxu0 %v1163
        %1220 = vmatprep.subr.mxu0 %v1162
        %1221 = vmatpush1.msra.mxu0 %v1161
        %1222 = vmatprep.subr.mxu0 %v1160
        %1223 = vmatpush1.msra.mxu0 %v1159
        %1224 = vmatprep.subr.mxu0 %v1158
        %1225 = vmatpush1.msra.mxu0 %v1157
        %1226 = vmatprep.subr.mxu0 0.0
        %1227 = vmatpush2.msra.mxu0 0.0
        %1228 = vmatprep.subr.mxu0 0.0
        %1229 = vmatpush2.msra.mxu0 0.0
        %1230 = vmatprep.subr.mxu0 0.0
        %1231 = vmatpush2.msra.mxu0 0.0
        %1232 = vmatprep.subr.mxu0 0.0
        %1233 = vmatpush2.msra.mxu0 0.0
        %1234 = vmatprep.subr.mxu0 0.0
        %1235 = vmatpush2.msra.mxu0 0.0
        %1236 = vmatprep.subr.mxu0 0.0
        %1237 = vmatpush2.msra.mxu0 0.0
        %1238 = vmatprep.subr.mxu0 0.0
        %1239 = vmatpush2.msra.mxu0 0.0
        %1240 = vmatprep.subr.mxu0 0.0
        %1241 = vmatpush2.msra.mxu0 0.0
        %1242 = vmatprep.subr.mxu0 0.0
        %1243 = vmatpush2.msra.mxu0 0.0
        %1244 = vmatprep.subr.mxu0 0.0
        %1245 = vmatpush2.msra.mxu0 0.0
        %1246 = vmatprep.subr.mxu0 0.0
        %1247 = vmatpush2.msra.mxu0 0.0
        %1248 = vmatprep.subr.mxu0 0.0
        %1249 = vmatpush2.msra.mxu0 0.0
        %1250 = vmatprep.subr.mxu0 0.0
        %1251 = vmatpush2.msra.mxu0 0.0
        %1252 = vmatprep.subr.mxu0 0.0
        %1253 = vmatpush2.msra.mxu0 0.0
        %1254 = vmatprep.subr.mxu0 0.0
        %1255 = vmatpush2.msra.mxu0 0.0
        %1256 = vmatprep.subr.mxu0 0.0
        %1257 = vmatpush2.msra.mxu0 0.0
        %1258 = vmatprep.mubr.f32.mxu0 0.0
        %1259 = vmatmul.mubr.f32.gmra.mxu0 %v1183
        %v1260 = vpop.f32.mrf.mxu0
        %v1261 = vadd.f32 %v1171, %v1260
        %v1262 = vpop.f32.mrf.mxu0
        %v1263 = vadd.f32 %v1171, %v1262
        %1264 = vmatprep.mubr.f32.mxu0 0.0
        %1265 = vmatmul.mubr.f32.gmra.mxu0 %v1186
        %v1266 = vpop.f32.mrf.mxu0
        %v1267 = vpop.f32.mrf.mxu0
        %1268 = vmatprep.mubr.f32.mxu0 0.0
        %1269 = vmatmul.mubr.f32.gmra.mxu0 %v1189
        %v1270 = vpop.f32.mrf.mxu0
        %v1271 = vpop.f32.mrf.mxu0
        %1272 = vmatprep.mubr.f32.mxu0 0.0
        %1273 = vmatmul.mubr.f32.gmra.mxu0 %v1192
        %v1274 = vpop.f32.mrf.mxu0
        %v1275 = vpop.f32.mrf.mxu0
        %1276 = vdwg.mxu0
        %v1279 = vcombine.low %v1261, %v1263
        %1281 = vst [vmem:[%s280] sm:$0xff] %v1279
        %s1282 = sand.u32 %s147, 1
        %s1283 = scalar_lea.sflag [#allocation4], %s1282
        %s1284 = sand.u32 %s147, 1
        %s1285 = smul.addr %s1284, 8
        %s1286 = scalar_lea.vmem [#allocation3], %s1285
        // Predicated region
        $region64: #{tpu_custom_call.1} parent=58 // pred_check
          %p1287 = pneg %p157
        $region65: #{tpu_custom_call.1} parent=58 // pred_check_branch
          %1289 = sbr.rel (%p1287) target = $region67
        $region66: #{tpu_custom_call.1} parent=58 // pred_region
          %s1290 = smul.u32 2, %s19
          %s1292 = ssub.s32 128, 128
          %1293 = vsyncadd %s1283, %s1292
          %s1294 = smul.addr %s1290, 64
          %s1295 = scalar_lea.hbm %s5, %s1294
          %s1297 = sshll.u32 %s1286, 4
          %s1298 = int_to_ptr.vmem [resolvable:$true] %s1297
          %1300 = dma.vmem_to_hbm [thread:$0]  %s1298, 128, %s1295, %s1283
        $region67: #{tpu_custom_call.1} parent=58 // pred_fallthru
          _
      $region59: #{tpu_custom_call.1} parent=5 // pred_fallthru
        _
      %p1301 = scmp.le.s32.totalorder 2, %s14
      // Predicated region
      $region68: #{tpu_custom_call.1} parent=5 // pred_check
        %p1302 = pneg %p1301
      $region69: #{tpu_custom_call.1} parent=5 // pred_check_branch
        %1304 = sbr.rel (%p1302) target = $region71
      $region70: #{tpu_custom_call.1} parent=5 // pred_region
        %s1305 = ssub.s32 %s14, 2
        // Predicated region
        $region72: #{tpu_custom_call.1} parent=70 // pred_check
          %p1306 = pneg %p163
        $region73: #{tpu_custom_call.1} parent=70 // pred_check_branch
          %1308 = sbr.rel (%p1306) target = $region75
        $region74: #{tpu_custom_call.1} parent=70 // pred_region
          %s1309 = sand.u32 %s148, 1
          %s1310 = scalar_lea.sflag [#allocation4], %s1309
          %s1311 = sand.u32 %s148, 1
          %s1312 = smul.addr %s1311, 8
          %s1313 = scalar_lea.vmem [#allocation3], %s1312
          %1314 = dma.done %s1310, 128
        $region75: #{tpu_custom_call.1} parent=70 // pred_fallthru
          _
      $region71: #{tpu_custom_call.1} parent=5 // pred_fallthru
        _
    $region6: #{tpu_custom_call.1} parent=1 // loop_footer
      %s18 = sadd.s32 1, %s14
    $region7: #{tpu_custom_call.1} parent=1 // loop_footer_branch
      %13 = sbr.rel target = $region3
    $region8: #{tpu_custom_call.1} parent=1 // loop_exit
      _
    %1315 = vsyncpa [#allocation4], 1
    %s1316 = scalar_lea.sflag [#allocation4], 1
    %1317 = vsyncpa %s1316, 1

</llo_original>
